<compile_context>
chip_gen: v6e
topology: v6e:2x2x1
jax: 0.10.0
libtpu: 0.0.40
codegen_flags: <defaults>
</compile_context>

<pallas_src>
import functools
from collections import namedtuple

import jax
import jax.numpy as jnp
from jax.experimental import pallas as pl
from jax.experimental.pallas import tpu as pltpu

KVCache = namedtuple("KVCache", ["k", "v"])

_LANE = 128


def _kv_proj_kernel(x_ref, w_ref, k_ref, v_ref):
    """Fused K/V projection for one M-tile.

    x_ref : [tm, D_in]          activations
    w_ref : [D_in, 2*D_out_p]   fused (Wk^T | Wv^T), lane-padded, VMEM-resident
    k_ref : [tm, D_out_p]       K output tile
    v_ref : [tm, D_out_p]       V output tile
    """
    kv = jnp.dot(x_ref[...], w_ref[...], preferred_element_type=jnp.float32)
    d = k_ref.shape[-1]  # lane-aligned split (D_out_p % 128 == 0 or full dim)
    k_ref[...] = kv[:, :d].astype(k_ref.dtype)
    v_ref[...] = kv[:, d:].astype(v_ref.dtype)


@functools.partial(jax.jit, static_argnames=("tm",))
def kv_copy_forward(hidden_states, wk, wv, *, tm=512):
    """Pallas forward for KVCopy.

    hidden_states: [B, S, D_in]
    wk, wv       : [D_out, D_in]  (PyTorch nn.Linear layout, bias=False)
    returns KVCache(k=[B, S, D_out], v=[B, S, D_out])
    """
    B, S, D_in = hidden_states.shape
    D_out = wk.shape[0]
    M = B * S
    out_dtype = hidden_states.dtype

    x2d = hidden_states.reshape(M, D_in)

    # Lane-pad the projection width so every output store stream is a multiple
    # of 128 lanes (unmasked vst).  Real heads with D_out % 128 == 0 skip both
    # the pad and the post-kernel strip.
    D_out_p = D_out if D_out % _LANE == 0 else (D_out // _LANE + 1) * _LANE

    # One-time weight prep (tiny vs. activation traffic): [out, in] -> [in, out],
    # zero-pad the out dim, concat K|V along out.  The kernel then contracts
    # LHS last dim with RHS first dim -> pure MXU, weight consumed as-is.
    wk_t = wk.astype(out_dtype).T
    wv_t = wv.astype(out_dtype).T
    if D_out_p != D_out:
        pad = ((0, 0), (0, D_out_p - D_out))
        wk_t = jnp.pad(wk_t, pad)
        wv_t = jnp.pad(wv_t, pad)
    w_fused = jnp.concatenate([wk_t, wv_t], axis=1)  # [D_in, 2*D_out_p]
    N = 2 * D_out_p

    # M tiling: no HBM-side padding -- the ragged tail block is handled by the
    # pipeline's bounded DMAs (tail garbage rows are never written back).
    tm_eff = M if M <= tm else tm
    grid = (pl.cdiv(M, tm_eff),)

    itemsize = jnp.dtype(out_dtype).itemsize
    cost = pl.CostEstimate(
        flops=2 * M * D_in * N,
        transcendentals=0,
        bytes_accessed=(M * D_in + D_in * N + 2 * M * D_out_p) * itemsize,
    )

    k2d, v2d = pl.pallas_call(
        _kv_proj_kernel,
        out_shape=(
            jax.ShapeDtypeStruct((M, D_out_p), out_dtype),
            jax.ShapeDtypeStruct((M, D_out_p), out_dtype),
        ),
        grid_spec=pltpu.PrefetchScalarGridSpec(
            num_scalar_prefetch=0,
            grid=grid,
            in_specs=[
                pl.BlockSpec((tm_eff, D_in), lambda i: (i, 0)),
                # Constant block index -> weight stays resident in VMEM.
                # TODO(synk): for very large D_in*D_out on v7x (64 MiB VMEM),
                # single-buffer the weight (pipeline_mode=pl.Buffered(1)) and/or
                # cast it to bf16, or add an N grid axis to stream it.
                pl.BlockSpec((D_in, N), lambda i: (0, 0)),
            ],
            out_specs=(
                pl.BlockSpec((tm_eff, D_out_p), lambda i: (i, 0)),
                pl.BlockSpec((tm_eff, D_out_p), lambda i: (i, 0)),
            ),
        ),
        compiler_params=pltpu.CompilerParams(
            dimension_semantics=("parallel",),
            vmem_limit_bytes=48 * 1024 * 1024,  # fits v7x's 64 MiB physical VMEM
        ),
        cost_estimate=cost,
    )(x2d, w_fused)
    # TODO(synk): if the downstream KV cache is a persistent buffer, write into
    # it directly via input_output_aliases instead of returning fresh arrays.

    if D_out_p != D_out:
        k2d = k2d[:, :D_out]
        v2d = v2d[:, :D_out]
    k = k2d.reshape(B, S, D_out)
    v = v2d.reshape(B, S, D_out)
    return KVCache(k=k, v=v)


def init_kv_copy_params(key, inner_dim, cross_attention_dim=None,
                        dtype=jnp.float32):
    """Deterministic synthetic parameters matching KVCopy.__init__ shapes.

    to_k / to_v are Linear(in=cross_attention_dim or inner_dim, out=inner_dim,
    bias=False); PyTorch stores weight as [out_features, in_features].
    """
    in_dim = cross_attention_dim or inner_dim
    k_key, v_key = jax.random.split(key)
    scale = 1.0 / jnp.sqrt(jnp.asarray(in_dim, dtype))
    wk = jax.random.uniform(k_key, (inner_dim, in_dim), dtype,
                            minval=-scale, maxval=scale)
    wv = jax.random.uniform(v_key, (inner_dim, in_dim), dtype,
                            minval=-scale, maxval=scale)
    return wk, wv


def _check(hidden_states, wk, wv):
    cache = kv_copy_forward(hidden_states, wk, wv)
    jax.block_until_ready(cache.k)
    jax.block_until_ready(cache.v)
    k_ref = hidden_states @ wk.T
    v_ref = hidden_states @ wv.T
    assert cache.k.shape == k_ref.shape and cache.v.shape == v_ref.shape
    assert jnp.allclose(cache.k, k_ref, atol=1e-5, rtol=1e-5)
    assert jnp.allclose(cache.v, v_ref, atol=1e-5, rtol=1e-5)


if __name__ == "__main__":
    key = jax.random.PRNGKey(0)
    x_key, p_key, x2_key, p2_key, x3_key = jax.random.split(key, 5)

    # Small shapes consistent with the module's forward.
    batch, seq = 2, 8
    cross_attention_dim = 32   # input feature dim of hidden_states
    inner_dim = 32             # output feature dim of to_k / to_v

    wk, wv = init_kv_copy_params(p_key, inner_dim, cross_attention_dim)

    # 1) Small case: single M-tile path, lane-padded (D_out=32 -> 128) outputs.
    hidden_states = jax.random.normal(
        x_key, (batch, seq, cross_attention_dim), jnp.float32
    )
    _check(hidden_states, wk, wv)

    # 2) Medium case: tiled M (tm=512) with a ragged tail block (no HBM pad).
    hidden_states2 = jax.random.normal(
        x2_key, (2, 520, cross_attention_dim), jnp.float32
    )
    _check(hidden_states2, wk, wv)

    # 3) Lane-aligned head (D_out=128): no-pad / no-strip fast path.
    wk3, wv3 = init_kv_copy_params(p2_key, 128, cross_attention_dim)
    hidden_states3 = jax.random.normal(
        x3_key, (batch, seq, cross_attention_dim), jnp.float32
    )
    _check(hidden_states3, wk3, wv3)

    print("KERNEL_OK")
</pallas_src>

<mosaic_0001>
module attributes {stable_mosaic.version = 11 : i64} {
  func.func @_kv_proj_kernel(%arg0: i32, %arg1: memref<16x32xf32, #tpu.memory_space<vmem>>, %arg2: memref<32x256xf32, #tpu.memory_space<vmem>>, %arg3: memref<16x128xf32, #tpu.memory_space<vmem>>, %arg4: memref<16x128xf32, #tpu.memory_space<vmem>>) attributes {dimension_semantics = [#tpu.dimension_semantics<parallel>], iteration_bounds = array<i64: 1>, scalar_prefetch = 0 : i64, scratch_operands = 0 : i64, tpu.core_type = #tpu.core_type<tc>, window_params = [{transform_indices = @transform_0, window_bounds = array<i64: 16, 32>}, {pipeline_mode = #tpu.pipeline_mode<synchronous>, transform_indices = @transform_1, window_bounds = array<i64: 32, 256>}, {transform_indices = @transform_2, window_bounds = array<i64: 16, 128>}, {transform_indices = @transform_3, window_bounds = array<i64: 16, 128>}]} {
    %c0 = arith.constant 0 : index
    %c0_0 = arith.constant 0 : index
    %0 = vector.load %arg1[%c0, %c0_0] : memref<16x32xf32, #tpu.memory_space<vmem>>, vector<16x32xf32>
    %c0_1 = arith.constant 0 : index
    %c0_2 = arith.constant 0 : index
    %1 = vector.load %arg2[%c0_1, %c0_2] : memref<32x256xf32, #tpu.memory_space<vmem>>, vector<32x256xf32>
    %cst = arith.constant dense<0.000000e+00> : vector<16x256xf32>
    %2 = tpu.matmul %0, %1, %cst {dimension_numbers = #tpu.dot_dimension_numbers<[1], [0], [0], [1], [0, 0, 1, 1], [], []>} : vector<16x32xf32>, vector<32x256xf32>, vector<16x256xf32> -> vector<16x256xf32>
    %3 = vector.extract_strided_slice %2 {offsets = [0, 0], sizes = [16, 128], strides = [1, 1]} : vector<16x256xf32> to vector<16x128xf32>
    %c0_3 = arith.constant 0 : index
    %c0_4 = arith.constant 0 : index
    %4 = vector.load %arg3[%c0_3, %c0_4] : memref<16x128xf32, #tpu.memory_space<vmem>>, vector<16x128xf32>
    tpu.vector_store %arg3[%c0_3, %c0_4], %3 {strides = array<i32>} : memref<16x128xf32, #tpu.memory_space<vmem>>, vector<16x128xf32>,
    %5 = vector.extract_strided_slice %2 {offsets = [0, 128], sizes = [16, 128], strides = [1, 1]} : vector<16x256xf32> to vector<16x128xf32>
    %c0_5 = arith.constant 0 : index
    %c0_6 = arith.constant 0 : index
    %6 = vector.load %arg4[%c0_5, %c0_6] : memref<16x128xf32, #tpu.memory_space<vmem>>, vector<16x128xf32>
    tpu.vector_store %arg4[%c0_5, %c0_6], %5 {strides = array<i32>} : memref<16x128xf32, #tpu.memory_space<vmem>>, vector<16x128xf32>,
    return
  }
  func.func @transform_0(%arg0: i32) -> (i32, i32) {
    %c0_i32 = arith.constant 0 : i32
    %c0_i32_0 = arith.constant 0 : i32
    return %arg0, %c0_i32 : i32, i32
  }
  func.func @transform_1(%arg0: i32) -> (i32, i32) {
    %c0_i32 = arith.constant 0 : i32
    %c0_i32_0 = arith.constant 0 : i32
    %c0_i32_1 = arith.constant 0 : i32
    return %c0_i32, %c0_i32_0 : i32, i32
  }
  func.func @transform_2(%arg0: i32) -> (i32, i32) {
    %c0_i32 = arith.constant 0 : i32
    %c0_i32_0 = arith.constant 0 : i32
    return %arg0, %c0_i32 : i32, i32
  }
  func.func @transform_3(%arg0: i32) -> (i32, i32) {
    %c0_i32 = arith.constant 0 : i32
    %c0_i32_0 = arith.constant 0 : i32
    return %arg0, %c0_i32 : i32, i32
  }
}

</mosaic_0001>

<llo_original>
// kernel: kv_copy_forward.1
$region0: #{kv_copy_forward.1}
  #allocation0 [shape = 'u32[]', space=smem, size = 0x4, offset = 0x4, fixed_abs, tag = 'smem constant byte address 0x4 - core index']
  #allocation1 [shape = 'u32[144,128]{1,0:T(1,128)}', space=vmem, size = 0x12000, scoped, tag = 'internal scratch']
  %s0 = inlined_call_operand.vmem [shape: f32[16,32], index: 0, kind: input, shape index: {}]
  %s1 = inlined_call_operand.vmem [shape: f32[32,256], index: 1, kind: input, shape index: {}]
  %s2 = inlined_call_operand.vmem [shape: f32[16,128], index: 2, kind: output, shape index: {0}]
  %s3 = inlined_call_operand.vmem [shape: f32[16,128], index: 3, kind: output, shape index: {1}]
  %4 = xla_tuple %s2, %s3
  %s5 = sld [smem:[#allocation0]]
  $region26: #{kv_copy_forward.1} parent=0
    _
  %s7 = ssub.s32 1, %s5
  %s8 = scalar_select 0, %s7, %s5
  // Predicated region
  $region2: #{kv_copy_forward.1} parent=0 // pred_check
    _
  $region3: #{kv_copy_forward.1} parent=0 // pred_check_branch
    %10 = sbr.rel (0) target = $region5
  $region4: #{kv_copy_forward.1} parent=0 // pred_region
    _
  $region5: #{kv_copy_forward.1} parent=0 // pred_fallthru
    _
  // Predicated region
  $region6: #{kv_copy_forward.1} parent=0 // pred_check
    _
  $region7: #{kv_copy_forward.1} parent=0 // pred_check_branch
    %12 = sbr.rel (0) target = $region9
  $region8: #{kv_copy_forward.1} parent=0 // pred_region
    _
  $region9: #{kv_copy_forward.1} parent=0 // pred_fallthru
    _
  %v13 = vld [vmem:[%s0] sm:$0xff]
  %v14 = vld [vmem:[%s0 + $0x8] sm:$0xff]
  %v15 = vld [vmem:[%s1] sm:$0xff]
  %v16 = vld [vmem:[%s1 + $0x8] sm:$0xff]
  %v17 = vld [vmem:[%s1 + $0x10] sm:$0xff]
  %v18 = vld [vmem:[%s1 + $0x18] sm:$0xff]
  %v19 = vld [vmem:[%s1 + $0x20] sm:$0xff]
  %v20 = vld [vmem:[%s1 + $0x28] sm:$0xff]
  %v21 = vld [vmem:[%s1 + $0x30] sm:$0xff]
  %v22 = vld [vmem:[%s1 + $0x38] sm:$0xff]
  %vm23 = vcmask 261120
  %v25 = vsel %vm23, %v13, 0
  %v28 = vsel %vm23, %v14, 0
  %30 = vmatprep.subr.mxu0 0.0
  %31 = vmatpush1.msra.mxu0 0.0
  %32 = vmatprep.subr.mxu0 0.0
  %33 = vmatpush1.msra.mxu0 0.0
  %34 = vmatprep.subr.mxu0 0.0
  %35 = vmatpush1.msra.mxu0 0.0
  %36 = vmatprep.subr.mxu0 0.0
  %37 = vmatpush1.msra.mxu0 0.0
  %38 = vmatprep.subr.mxu0 0.0
  %39 = vmatpush1.msra.mxu0 0.0
  %40 = vmatprep.subr.mxu0 0.0
  %41 = vmatpush1.msra.mxu0 0.0
  %42 = vmatprep.subr.mxu0 0.0
  %43 = vmatpush1.msra.mxu0 0.0
  %44 = vmatprep.subr.mxu0 0.0
  %45 = vmatpush1.msra.mxu0 0.0
  %46 = vmatprep.subr.mxu0 0.0
  %47 = vmatpush1.msra.mxu0 0.0
  %48 = vmatprep.subr.mxu0 0.0
  %49 = vmatpush1.msra.mxu0 0.0
  %50 = vmatprep.subr.mxu0 0.0
  %51 = vmatpush1.msra.mxu0 0.0
  %52 = vmatprep.subr.mxu0 0.0
  %53 = vmatpush1.msra.mxu0 0.0
  %54 = vmatprep.subr.mxu0 %v22
  %55 = vmatpush1.msra.mxu0 %v21
  %56 = vmatprep.subr.mxu0 %v20
  %57 = vmatpush1.msra.mxu0 %v19
  %58 = vmatprep.subr.mxu0 %v18
  %59 = vmatpush1.msra.mxu0 %v17
  %60 = vmatprep.subr.mxu0 %v16
  %61 = vmatpush1.msra.mxu0 %v15
  %62 = vmatprep.subr.mxu0 0.0
  %63 = vmatpush2.msra.mxu0 0.0
  %64 = vmatprep.subr.mxu0 0.0
  %65 = vmatpush2.msra.mxu0 0.0
  %66 = vmatprep.subr.mxu0 0.0
  %67 = vmatpush2.msra.mxu0 0.0
  %68 = vmatprep.subr.mxu0 0.0
  %69 = vmatpush2.msra.mxu0 0.0
  %70 = vmatprep.subr.mxu0 0.0
  %71 = vmatpush2.msra.mxu0 0.0
  %72 = vmatprep.subr.mxu0 0.0
  %73 = vmatpush2.msra.mxu0 0.0
  %74 = vmatprep.subr.mxu0 0.0
  %75 = vmatpush2.msra.mxu0 0.0
  %76 = vmatprep.subr.mxu0 0.0
  %77 = vmatpush2.msra.mxu0 0.0
  %78 = vmatprep.subr.mxu0 0.0
  %79 = vmatpush2.msra.mxu0 0.0
  %80 = vmatprep.subr.mxu0 0.0
  %81 = vmatpush2.msra.mxu0 0.0
  %82 = vmatprep.subr.mxu0 0.0
  %83 = vmatpush2.msra.mxu0 0.0
  %84 = vmatprep.subr.mxu0 0.0
  %85 = vmatpush2.msra.mxu0 0.0
  %86 = vmatprep.subr.mxu0 0.0
  %87 = vmatpush2.msra.mxu0 0.0
  %88 = vmatprep.subr.mxu0 0.0
  %89 = vmatpush2.msra.mxu0 0.0
  %90 = vmatprep.subr.mxu0 0.0
  %91 = vmatpush2.msra.mxu0 0.0
  %92 = vmatprep.subr.mxu0 0.0
  %93 = vmatpush2.msra.mxu0 0.0
  %94 = vmatprep.mubr.f32.mxu0 0.0
  %95 = vmatmul.mubr.f32.gmra.mxu0 %v25
  %v96 = vpop.f32.mrf.mxu0
  %v97 = vadd.f32 0.0, %v96
  %v98 = vpop.f32.mrf.mxu0
  %v99 = vadd.f32 0.0, %v98
  %100 = vmatprep.mubr.f32.mxu0 0.0
  %101 = vmatmul.mubr.f32.gmra.mxu0 %v28
  %v102 = vpop.f32.mrf.mxu0
  %v103 = vadd.f32 0.0, %v102
  %v104 = vpop.f32.mrf.mxu0
  %v105 = vadd.f32 0.0, %v104
  %106 = vdwg.mxu0
  %107 = vst [vmem:[%s2] sm:$0xff] %v97
  %108 = vst [vmem:[%s2 + $0x8] sm:$0xff] %v103
  %109 = vst [vmem:[%s3] sm:$0xff] %v99
  %110 = vst [vmem:[%s3 + $0x8] sm:$0xff] %v105
  // Predicated region
  $region10: #{kv_copy_forward.1} parent=0 // pred_check
    _
  $region11: #{kv_copy_forward.1} parent=0 // pred_check_branch
    %112 = sbr.rel (0) target = $region13
  $region12: #{kv_copy_forward.1} parent=0 // pred_region
    _
  $region13: #{kv_copy_forward.1} parent=0 // pred_fallthru
    _
  // Predicated region
  $region14: #{kv_copy_forward.1} parent=0 // pred_check
    _
  $region15: #{kv_copy_forward.1} parent=0 // pred_check_branch
    %114 = sbr.rel (0) target = $region17
  $region16: #{kv_copy_forward.1} parent=0 // pred_region
    _
  $region17: #{kv_copy_forward.1} parent=0 // pred_fallthru
    _
  // Predicated region
  $region18: #{kv_copy_forward.1} parent=0 // pred_check
    _
  $region19: #{kv_copy_forward.1} parent=0 // pred_check_branch
    %116 = sbr.rel (0) target = $region21
  $region20: #{kv_copy_forward.1} parent=0 // pred_region
    _
  $region21: #{kv_copy_forward.1} parent=0 // pred_fallthru
    _
  // Predicated region
  $region22: #{kv_copy_forward.1} parent=0 // pred_check
    _
  $region23: #{kv_copy_forward.1} parent=0 // pred_check_branch
    %118 = sbr.rel (0) target = $region25
  $region24: #{kv_copy_forward.1} parent=0 // pred_region
    _
  $region25: #{kv_copy_forward.1} parent=0 // pred_fallthru
    _

</llo_original>
